<compile_context>
chip_gen: v6e
topology: v6e:2x2x1
jax: 0.10.0
libtpu: 0.0.40
codegen_flags: <defaults>
</compile_context>

<pallas_src>
import math
import jax
import jax.numpy as jnp
from jax.experimental import pallas as pl
from jax.experimental.pallas import tpu as pltpu


def _round_up(x, m):
    return ((x + m - 1) // m) * m


def _cdiv(a, b):
    return -(-a // b)


def _vmem_budget_bytes():
    """Usable per-kernel VMEM budget derived from the actual chip.

    v5e/v6e: 128 MiB per TensorCore, v7x: 64 MiB.  Keep ~20% headroom for
    Mosaic internal scratch / semaphores (never request the full capacity).
    """
    try:
        cap = int(pltpu.get_tpu_info().vmem_capacity_bytes)
    except Exception:
        cap = 0
    if cap <= 0:
        cap = 64 * 1024 * 1024  # conservative default = v7x per-TC VMEM
    return max(16 * 1024 * 1024, int(cap * 0.8))


def _class_pad_multiple(n_classes):
    """Lane padding for the class axis: 128 always works; for larger class
    counts on 256-wide-MXU parts (v6e/v7x) round to 256 to avoid half-filled
    MXU passes.  Kept at 128 for small C (that regime is exp/EUP-bound and
    wider padding only adds softmax work)."""
    if n_classes <= 128:
        return 128
    try:
        kind = jax.devices()[0].device_kind.lower()
    except Exception:
        return 128
    for tag in ("v2", "v3", "v4", "v5"):
        if tag in kind:
            return 128  # 128x128 MXU generations
    return 256          # v6e / v7x: 256-wide MXU


def _classifier_kernel(x_ref, w_ref, b_ref, o_ref):
    # x_ref: (tm, H) input dtype; w_ref: (H, C_pad) pre-transposed (possibly
    # bf16); b_ref: (1, C_pad) f32 with -1e30 in padded classes; o_ref:
    # (tm, C_pad) output dtype.
    x = x_ref[...]
    if x.dtype != w_ref.dtype:
        x = x.astype(w_ref.dtype)  # cheap VPU cast (e.g. f32 -> bf16 operands)
    logits = jnp.dot(x, w_ref[...], preferred_element_type=jnp.float32)
    logits = logits + b_ref[...]
    # Numerically stable log_softmax over the lane (class) axis, f32 stats,
    # keepdims so the (tm, 1) stats never get relayouted.
    m = jnp.max(logits, axis=-1, keepdims=True)
    shifted = logits - m
    lse = jnp.log(jnp.sum(jnp.exp(shifted), axis=-1, keepdims=True))
    o_ref[...] = (shifted - lse).astype(o_ref.dtype)


def prepare_classifier_params(weight, bias, *, compute_dtype=None):
    """One-time parameter prep (do NOT redo per forward call):
      * transpose nn.Linear's [C, H] weight to [H, C_pad] so the kernel runs a
        plain row-major MXU matmul (no in-kernel transpose / XLU relayout),
      * pad the class axis to a lane-dense multiple (128 / 256),
      * optionally cast weight to a narrower MXU dtype (bf16 recommended on
        all generations; accumulation + softmax stay f32),
      * pad the bias with -1e30 so padded classes never win the row max or
        contribute to the logsumexp.
    Returns (wt [H, C_pad], b_pad [1, C_pad] f32, n_classes)."""
    c, h = weight.shape
    assert bias.shape == (c,)
    c_pad = _round_up(c, _class_pad_multiple(c))
    w_dtype = jnp.dtype(compute_dtype) if compute_dtype is not None else weight.dtype
    wt = jnp.zeros((h, c_pad), dtype=w_dtype).at[:, :c].set(weight.T.astype(w_dtype))
    b_pad = (jnp.full((1, c_pad), -1e30, dtype=jnp.float32)
             .at[0, :c].set(bias.astype(jnp.float32)))
    return wt, b_pad, c


def _build_call(n, h, c_pad, tm, out_dtype, vmem_limit, single_buffer_params):
    grid = (_cdiv(n, tm),)
    x_spec = pl.BlockSpec((tm, h), lambda i: (i, 0))
    o_spec = pl.BlockSpec((tm, c_pad), lambda i: (i, 0))
    if single_buffer_params:
        # Weight / bias are grid-invariant -> single-buffer them, saving
        # h * c_pad * itemsize of VMEM (often the largest single allocation).
        w_spec = pl.BlockSpec((h, c_pad), lambda i: (0, 0),
                              pipeline_mode=pl.Buffered(1))
        b_spec = pl.BlockSpec((1, c_pad), lambda i: (0, 0),
                              pipeline_mode=pl.Buffered(1))
    else:
        w_spec = pl.BlockSpec((h, c_pad), lambda i: (0, 0))
        b_spec = pl.BlockSpec((1, c_pad), lambda i: (0, 0))
    return pl.pallas_call(
        _classifier_kernel,
        out_shape=jax.ShapeDtypeStruct((n, c_pad), out_dtype),
        grid_spec=pltpu.PrefetchScalarGridSpec(
            num_scalar_prefetch=0,
            grid=grid,
            in_specs=[x_spec, w_spec, b_spec],
            out_specs=o_spec,
        ),
        compiler_params=pltpu.CompilerParams(
            dimension_semantics=("parallel",),   # row tiles shard across TCs on v7x
            vmem_limit_bytes=int(vmem_limit),
        ),
    )


def classifier_apply(features, prepared):
    """features: [N, H] -> log-probs [N, C] (== log_softmax(x @ W^T + b, -1))."""
    wt, b_pad, n_classes = prepared
    n, h = features.shape
    assert wt.shape[0] == h
    c_pad = wt.shape[1]
    out_dtype = features.dtype

    x_it = jnp.dtype(features.dtype).itemsize
    w_it = jnp.dtype(wt.dtype).itemsize
    o_it = jnp.dtype(out_dtype).itemsize
    # Sublane granularity: 8 rows (f32), 16 (bf16/f16), 32 (int8/fp8).
    sub = 8 if x_it >= 4 else (16 if x_it == 2 else 32)

    # ---- capacity-driven row tile -------------------------------------------
    budget = _vmem_budget_bytes()
    fixed = h * c_pad * w_it + c_pad * 4 + (1 << 20)   # weight + bias + slack
    per_row = (2 * h * x_it          # x tile, double-buffered
               + h * w_it            # in-kernel bf16 copy of the x tile
               + 2 * c_pad * o_it    # out tile, double-buffered
               + 3 * c_pad * 4)      # f32 logits / softmax temporaries
    tm = (budget - fixed) // per_row
    # TODO(synk): if the weight alone exceeds the VMEM budget (vocabulary-scale
    # C / very large H), add C- and K-axis grid tiling with a scratch
    # accumulator and an online logsumexp instead of shrinking tm.
    tm = min(int(tm), 1024, _round_up(n, sub))
    tm = max(sub, (tm // sub) * sub)
    # v7x megacore: ensure >= 2 row tiles when the batch allows it so
    # "parallel" actually shards across the two TensorCores (the extra grid
    # step is a negligible ~0.35 us on single-TC parts).
    if n >= 2 * sub and _cdiv(n, tm) < 2:
        tm = _round_up(_cdiv(n, 2), sub)

    est = fixed + tm * per_row
    vmem_limit = min(budget, max(int(1.5 * est), 16 * 1024 * 1024))

    # Ragged tail rows are handled by Pallas (partial last block, masked
    # writeback) -> no wrapper-side N-padding copy of the input.
    try:
        out = _build_call(n, h, c_pad, tm, out_dtype, vmem_limit, True)(
            features, wt, b_pad)
    except Exception:
        out = _build_call(n, h, c_pad, tm, out_dtype, vmem_limit, False)(
            features, wt, b_pad)

    if c_pad != n_classes:
        out = out[:, :n_classes]   # drop the -1e30 padded classes
    return out


def classifier_forward(features, weight, bias, *, compute_dtype=None):
    """Convenience one-shot API (PyTorch-layout weight [C, H]).  For repeated
    calls, run prepare_classifier_params() once and reuse it with
    classifier_apply()."""
    return classifier_apply(
        features,
        prepare_classifier_params(weight, bias, compute_dtype=compute_dtype))


def init_classifier_params(key, n_hidden, n_classes, dtype=jnp.float32):
    """Xavier-uniform weight (torch.nn.init.xavier_uniform_), zero bias."""
    limit = math.sqrt(6.0 / (n_hidden + n_classes))
    weight = jax.random.uniform(
        key, (n_classes, n_hidden), minval=-limit, maxval=limit, dtype=dtype)
    bias = jnp.zeros((n_classes,), dtype=dtype)
    return weight, bias


if __name__ == "__main__":
    key = jax.random.PRNGKey(0)
    k_feat, k_w, k_feat2 = jax.random.split(key, 3)

    batch, n_hidden, n_classes = 8, 32, 16
    features = jax.random.normal(k_feat, (batch, n_hidden), dtype=jnp.float32)
    weight, bias = init_classifier_params(k_w, n_hidden, n_classes)
    ref = jax.nn.log_softmax(features @ weight.T + bias, axis=-1)

    # 1) Exact path: native f32 MXU operands, parameters prepared once.
    prepared = prepare_classifier_params(weight, bias)
    out = jax.block_until_ready(classifier_apply(features, prepared))
    assert out.shape == (batch, n_classes)
    assert jnp.allclose(out, ref, atol=1e-5, rtol=1e-5)

    # 2) Ragged batch (N not a multiple of the sublane tile): exercises the
    #    partial tail block (no wrapper-side input padding copy).
    features2 = jax.random.normal(k_feat2, (13, n_hidden), dtype=jnp.float32)
    out2 = jax.block_until_ready(classifier_apply(features2, prepared))
    ref2 = jax.nn.log_softmax(features2 @ weight.T + bias, axis=-1)
    assert out2.shape == (13, n_classes)
    assert jnp.allclose(out2, ref2, atol=1e-5, rtol=1e-5)

    # 3) bf16 MXU-operand path (recommended throughput mode on v5e/v6e/v7x);
    #    accumulation and the softmax stay f32.
    prepared_bf16 = prepare_classifier_params(weight, bias,
                                              compute_dtype=jnp.bfloat16)
    out_bf16 = jax.block_until_ready(classifier_apply(features, prepared_bf16))
    assert out_bf16.shape == (batch, n_classes)
    assert jnp.allclose(out_bf16, ref, atol=5e-2, rtol=5e-2)

    print("KERNEL_OK")
</pallas_src>

<mosaic_0001>
module attributes {stable_mosaic.version = 11 : i64} {
  func.func @_classifier_kernel(%arg0: i32, %arg1: memref<8x32xf32, #tpu.memory_space<vmem>>, %arg2: memref<32x128xf32, #tpu.memory_space<vmem>>, %arg3: memref<1x128xf32, #tpu.memory_space<vmem>>, %arg4: memref<8x128xf32, #tpu.memory_space<vmem>>) attributes {dimension_semantics = [#tpu.dimension_semantics<parallel>], iteration_bounds = array<i64: 1>, scalar_prefetch = 0 : i64, scratch_operands = 0 : i64, tpu.core_type = #tpu.core_type<tc>, window_params = [{transform_indices = @transform_0, window_bounds = array<i64: 8, 32>}, {pipeline_mode = #tpu.pipeline_mode<synchronous>, transform_indices = @transform_1, window_bounds = array<i64: 32, 128>}, {pipeline_mode = #tpu.pipeline_mode<synchronous>, transform_indices = @transform_2, window_bounds = array<i64: 1, 128>}, {transform_indices = @transform_3, window_bounds = array<i64: 8, 128>}]} {
    %c0 = arith.constant 0 : index
    %c0_0 = arith.constant 0 : index
    %0 = vector.load %arg1[%c0, %c0_0] : memref<8x32xf32, #tpu.memory_space<vmem>>, vector<8x32xf32>
    %c0_1 = arith.constant 0 : index
    %c0_2 = arith.constant 0 : index
    %1 = vector.load %arg2[%c0_1, %c0_2] : memref<32x128xf32, #tpu.memory_space<vmem>>, vector<32x128xf32>
    %cst = arith.constant dense<0.000000e+00> : vector<8x128xf32>
    %2 = tpu.matmul %0, %1, %cst {dimension_numbers = #tpu.dot_dimension_numbers<[1], [0], [0], [1], [0, 0, 1, 1], [], []>} : vector<8x32xf32>, vector<32x128xf32>, vector<8x128xf32> -> vector<8x128xf32>
    %c0_3 = arith.constant 0 : index
    %c0_4 = arith.constant 0 : index
    %3 = vector.load %arg3[%c0_3, %c0_4] : memref<1x128xf32, #tpu.memory_space<vmem>>, vector<1x128xf32>
    %4 = vector.broadcast %3 : vector<1x128xf32> to vector<8x128xf32>
    %5 = arith.addf %2, %4 : vector<8x128xf32>
    %cst_5 = arith.constant dense<0xFF800000> : vector<8xf32>
    %6 = vector.multi_reduction <maximumf>, %5, %cst_5 [1] : vector<8x128xf32> to vector<8xf32>
    %7 = vector.shape_cast %6 : vector<8xf32> to vector<8x1xf32>
    %8 = vector.broadcast %7 : vector<8x1xf32> to vector<8x128xf32>
    %9 = arith.subf %5, %8 : vector<8x128xf32>
    %10 = math.exp %9 : vector<8x128xf32>
    %cst_6 = arith.constant dense<0.000000e+00> : vector<8xf32>
    %11 = vector.multi_reduction <add>, %10, %cst_6 [1] : vector<8x128xf32> to vector<8xf32>
    %12 = vector.shape_cast %11 : vector<8xf32> to vector<8x1xf32>
    %13 = math.log %12 : vector<8x1xf32>
    %14 = vector.broadcast %13 : vector<8x1xf32> to vector<8x128xf32>
    %15 = arith.subf %9, %14 : vector<8x128xf32>
    %c0_7 = arith.constant 0 : index
    %c0_8 = arith.constant 0 : index
    %16 = vector.load %arg4[%c0_7, %c0_8] : memref<8x128xf32, #tpu.memory_space<vmem>>, vector<8x128xf32>
    tpu.vector_store %arg4[%c0_7, %c0_8], %15 {strides = array<i32>} : memref<8x128xf32, #tpu.memory_space<vmem>>, vector<8x128xf32>,
    return
  }
  func.func @transform_0(%arg0: i32) -> (i32, i32) {
    %c0_i32 = arith.constant 0 : i32
    %c0_i32_0 = arith.constant 0 : i32
    return %arg0, %c0_i32 : i32, i32
  }
  func.func @transform_1(%arg0: i32) -> (i32, i32) {
    %c0_i32 = arith.constant 0 : i32
    %c0_i32_0 = arith.constant 0 : i32
    %c0_i32_1 = arith.constant 0 : i32
    return %c0_i32, %c0_i32_0 : i32, i32
  }
  func.func @transform_2(%arg0: i32) -> (i32, i32) {
    %c0_i32 = arith.constant 0 : i32
    %c0_i32_0 = arith.constant 0 : i32
    %c0_i32_1 = arith.constant 0 : i32
    return %c0_i32, %c0_i32_0 : i32, i32
  }
  func.func @transform_3(%arg0: i32) -> (i32, i32) {
    %c0_i32 = arith.constant 0 : i32
    %c0_i32_0 = arith.constant 0 : i32
    return %arg0, %c0_i32 : i32, i32
  }
}

module attributes {stable_mosaic.version = 11 : i64} {
  func.func @_classifier_kernel(%arg0: i32, %arg1: memref<8x32xf32, #tpu.memory_space<vmem>>, %arg2: memref<32x128xf32, #tpu.memory_space<vmem>>, %arg3: memref<1x128xf32, #tpu.memory_space<vmem>>, %arg4: memref<8x128xf32, #tpu.memory_space<vmem>>) attributes {dimension_semantics = [#tpu.dimension_semantics<parallel>], iteration_bounds = array<i64: 1>, scalar_prefetch = 0 : i64, scratch_operands = 0 : i64, tpu.core_type = #tpu.core_type<tc>, window_params = [{transform_indices = @transform_0, window_bounds = array<i64: 8, 32>}, {pipeline_mode = #tpu.pipeline_mode<synchronous>, transform_indices = @transform_1, window_bounds = array<i64: 32, 128>}, {pipeline_mode = #tpu.pipeline_mode<synchronous>, transform_indices = @transform_2, window_bounds = array<i64: 1, 128>}, {transform_indices = @transform_3, window_bounds = array<i64: 8, 128>}]} {
    %c0 = arith.constant 0 : index
    %c0_0 = arith.constant 0 : index
    %0 = vector.load %arg1[%c0, %c0_0] : memref<8x32xf32, #tpu.memory_space<vmem>>, vector<8x32xf32>
    %c0_1 = arith.constant 0 : index
    %c0_2 = arith.constant 0 : index
    %1 = vector.load %arg2[%c0_1, %c0_2] : memref<32x128xf32, #tpu.memory_space<vmem>>, vector<32x128xf32>
    %cst = arith.constant dense<0.000000e+00> : vector<8x128xf32>
    %2 = tpu.matmul %0, %1, %cst {dimension_numbers = #tpu.dot_dimension_numbers<[1], [0], [0], [1], [0, 0, 1, 1], [], []>} : vector<8x32xf32>, vector<32x128xf32>, vector<8x128xf32> -> vector<8x128xf32>
    %c0_3 = arith.constant 0 : index
    %c0_4 = arith.constant 0 : index
    %3 = vector.load %arg3[%c0_3, %c0_4] : memref<1x128xf32, #tpu.memory_space<vmem>>, vector<1x128xf32>
    %4 = vector.broadcast %3 : vector<1x128xf32> to vector<8x128xf32>
    %5 = arith.addf %2, %4 : vector<8x128xf32>
    %cst_5 = arith.constant dense<0xFF800000> : vector<8xf32>
    %6 = vector.multi_reduction <maximumf>, %5, %cst_5 [1] : vector<8x128xf32> to vector<8xf32>
    %7 = vector.shape_cast %6 : vector<8xf32> to vector<8x1xf32>
    %8 = vector.broadcast %7 : vector<8x1xf32> to vector<8x128xf32>
    %9 = arith.subf %5, %8 : vector<8x128xf32>
    %10 = math.exp %9 : vector<8x128xf32>
    %cst_6 = arith.constant dense<0.000000e+00> : vector<8xf32>
    %11 = vector.multi_reduction <add>, %10, %cst_6 [1] : vector<8x128xf32> to vector<8xf32>
    %12 = vector.shape_cast %11 : vector<8xf32> to vector<8x1xf32>
    %13 = math.log %12 : vector<8x1xf32>
    %14 = vector.broadcast %13 : vector<8x1xf32> to vector<8x128xf32>
    %15 = arith.subf %9, %14 : vector<8x128xf32>
    %c0_7 = arith.constant 0 : index
    %c0_8 = arith.constant 0 : index
    %16 = vector.load %arg4[%c0_7, %c0_8] : memref<8x128xf32, #tpu.memory_space<vmem>>, vector<8x128xf32>
    tpu.vector_store %arg4[%c0_7, %c0_8], %15 {strides = array<i32>} : memref<8x128xf32, #tpu.memory_space<vmem>>, vector<8x128xf32>,
    return
  }
  func.func @transform_0(%arg0: i32) -> (i32, i32) {
    %c0_i32 = arith.constant 0 : i32
    %c0_i32_0 = arith.constant 0 : i32
    return %arg0, %c0_i32 : i32, i32
  }
  func.func @transform_1(%arg0: i32) -> (i32, i32) {
    %c0_i32 = arith.constant 0 : i32
    %c0_i32_0 = arith.constant 0 : i32
    %c0_i32_1 = arith.constant 0 : i32
    return %c0_i32, %c0_i32_0 : i32, i32
  }
  func.func @transform_2(%arg0: i32) -> (i32, i32) {
    %c0_i32 = arith.constant 0 : i32
    %c0_i32_0 = arith.constant 0 : i32
    %c0_i32_1 = arith.constant 0 : i32
    return %c0_i32, %c0_i32_0 : i32, i32
  }
  func.func @transform_3(%arg0: i32) -> (i32, i32) {
    %c0_i32 = arith.constant 0 : i32
    %c0_i32_0 = arith.constant 0 : i32
    return %arg0, %c0_i32 : i32, i32
  }
}

</mosaic_0001>

<llo_original>
// kernel: tpu_custom_call.1
$region0: #{tpu_custom_call.1}
  #allocation0 [shape = 'u32[]', space=smem, size = 0x4, offset = 0x4, fixed_abs, tag = 'smem constant byte address 0x4 - core index']
  #allocation1 [shape = 'u32[144,128]{1,0:T(1,128)}', space=vmem, size = 0x12000, scoped, tag = 'internal scratch']
  %s0 = inlined_call_operand.hbm [shape: f32[8,32], index: 0, kind: input, shape index: {}]
  %s1 = inlined_call_operand.hbm [shape: f32[32,128], index: 1, kind: input, shape index: {}]
  %s2 = inlined_call_operand.vmem [shape: f32[1,128], index: 2, kind: input, shape index: {}]
  %s3 = inlined_call_operand.hbm [shape: f32[8,128], index: 3, kind: output, shape index: {}]
  %s4 = sld [smem:[#allocation0]]
  $region30: #{tpu_custom_call.1} parent=0
    _
  %s6 = ssub.s32 1, %s4
  %s7 = scalar_select 0, %s6, %s4
  $region1: #{tpu_custom_call.1} parent=0
    #allocation2 [shape = 'u8[4096]{0}', space=vmem, size = 0x1000, scoped, tag = 'input window, operand 0, single buffered']
    #allocation3 [shape = 's32[1]{0}', space=sflag, size = 0x4, scoped, tag = 'scoped memory for tpu_custom_call.1']
    #allocation4 [shape = 's32[1]{0}', space=sflag, size = 0x4, scoped, tag = 'scoped memory for tpu_custom_call.1']
    #allocation5 [shape = 'u8[16384]{0}', space=vmem, size = 0x4000, scoped, tag = 'input window, operand 1, single buffered']
    #allocation6 [shape = 's32[1]{0}', space=sflag, size = 0x4, scoped, tag = 'scoped memory for tpu_custom_call.1']
    #allocation7 [shape = 'u8[4096]{0}', space=vmem, size = 0x1000, scoped, tag = 'output window, operand 0, single buffered']
    %8 = vsyncpa [#allocation3], 0
    %9 = vsyncpa [#allocation6], 0
    %10 = vsyncpa [#allocation4], 0
    // Predicated region
    $region2: #{tpu_custom_call.1} parent=1 // pred_check
      _
    $region3: #{tpu_custom_call.1} parent=1 // pred_check_branch
      %12 = sbr.rel (0) target = $region5
    $region4: #{tpu_custom_call.1} parent=1 // pred_region
      %s14 = ssub.s32 128, 128
      %15 = vsyncadd [#allocation3], %s14
      %s17 = sshll.u32 [#allocation2], 4
      %s18 = int_to_ptr.vmem [resolvable:$true] %s17
      %20 = dma.hbm_to_vmem [thread:$0]  %s0, 128, %s18, [#allocation3]
    $region5: #{tpu_custom_call.1} parent=1 // pred_fallthru
      _
    // Predicated region
    $region6: #{tpu_custom_call.1} parent=1 // pred_check
      _
    $region7: #{tpu_custom_call.1} parent=1 // pred_check_branch
      %22 = sbr.rel (0) target = $region9
    $region8: #{tpu_custom_call.1} parent=1 // pred_region
      %s24 = ssub.s32 512, 512
      %25 = vsyncadd [#allocation6], %s24
      %s26 = sshll.u32 [#allocation5], 4
      %s27 = int_to_ptr.vmem [resolvable:$true] %s26
      %32 = dma.hbm_to_vmem [thread:$0]  %s1, 512, %s27, [#allocation6], 128, 128, 8
    $region9: #{tpu_custom_call.1} parent=1 // pred_fallthru
      _
    // Predicated region
    $region10: #{tpu_custom_call.1} parent=1 // pred_check
      _
    $region11: #{tpu_custom_call.1} parent=1 // pred_check_branch
      %34 = sbr.rel (0) target = $region13
    $region12: #{tpu_custom_call.1} parent=1 // pred_region
      _
    $region13: #{tpu_custom_call.1} parent=1 // pred_fallthru
      _
    // Predicated region
    $region14: #{tpu_custom_call.1} parent=1 // pred_check
      _
    $region15: #{tpu_custom_call.1} parent=1 // pred_check_branch
      %36 = sbr.rel (0) target = $region17
    $region16: #{tpu_custom_call.1} parent=1 // pred_region
      %37 = dma.done [#allocation3], 128
    $region17: #{tpu_custom_call.1} parent=1 // pred_fallthru
      _
    // Predicated region
    $region18: #{tpu_custom_call.1} parent=1 // pred_check
      _
    $region19: #{tpu_custom_call.1} parent=1 // pred_check_branch
      %39 = sbr.rel (0) target = $region21
    $region20: #{tpu_custom_call.1} parent=1 // pred_region
      %40 = dma.done [#allocation6], 512
    $region21: #{tpu_custom_call.1} parent=1 // pred_fallthru
      _
    %v41 = vld [vmem:[#allocation2] sm:$0xff]
    %v42 = vld [vmem:[#allocation5] sm:$0xff]
    %v43 = vld [vmem:[#allocation5 + $0x8] sm:$0xff]
    %v44 = vld [vmem:[#allocation5 + $0x10] sm:$0xff]
    %v45 = vld [vmem:[#allocation5 + $0x18] sm:$0xff]
    %v46 = vld [vmem:[%s2] sm:$0x1]
    %v48 = vlaneseq
    %v49 = vshrl.u32 %v48, 7
    %v50 = vsub.s32 0, %v49
    %v51 = vrot.slane %v46, %v50
    %vm53 = vcmask 261120
    %v55 = vsel %vm53, %v41, 0
    %57 = vmatprep.subr.mxu0 0.0
    %58 = vmatpush1.msra.mxu0 0.0
    %59 = vmatprep.subr.mxu0 0.0
    %60 = vmatpush1.msra.mxu0 0.0
    %61 = vmatprep.subr.mxu0 0.0
    %62 = vmatpush1.msra.mxu0 0.0
    %63 = vmatprep.subr.mxu0 0.0
    %64 = vmatpush1.msra.mxu0 0.0
    %65 = vmatprep.subr.mxu0 0.0
    %66 = vmatpush1.msra.mxu0 0.0
    %67 = vmatprep.subr.mxu0 0.0
    %68 = vmatpush1.msra.mxu0 0.0
    %69 = vmatprep.subr.mxu0 0.0
    %70 = vmatpush1.msra.mxu0 0.0
    %71 = vmatprep.subr.mxu0 0.0
    %72 = vmatpush1.msra.mxu0 0.0
    %73 = vmatprep.subr.mxu0 0.0
    %74 = vmatpush1.msra.mxu0 0.0
    %75 = vmatprep.subr.mxu0 0.0
    %76 = vmatpush1.msra.mxu0 0.0
    %77 = vmatprep.subr.mxu0 0.0
    %78 = vmatpush1.msra.mxu0 0.0
    %79 = vmatprep.subr.mxu0 0.0
    %80 = vmatpush1.msra.mxu0 0.0
    %81 = vmatprep.subr.mxu0 0.0
    %82 = vmatpush1.msra.mxu0 %v45
    %83 = vmatprep.subr.mxu0 0.0
    %84 = vmatpush1.msra.mxu0 %v44
    %85 = vmatprep.subr.mxu0 0.0
    %86 = vmatpush1.msra.mxu0 %v43
    %87 = vmatprep.subr.mxu0 0.0
    %88 = vmatpush1.msra.mxu0 %v42
    %89 = vmatprep.subr.mxu0 0.0
    %90 = vmatpush2.msra.mxu0 0.0
    %91 = vmatprep.subr.mxu0 0.0
    %92 = vmatpush2.msra.mxu0 0.0
    %93 = vmatprep.subr.mxu0 0.0
    %94 = vmatpush2.msra.mxu0 0.0
    %95 = vmatprep.subr.mxu0 0.0
    %96 = vmatpush2.msra.mxu0 0.0
    %97 = vmatprep.subr.mxu0 0.0
    %98 = vmatpush2.msra.mxu0 0.0
    %99 = vmatprep.subr.mxu0 0.0
    %100 = vmatpush2.msra.mxu0 0.0
    %101 = vmatprep.subr.mxu0 0.0
    %102 = vmatpush2.msra.mxu0 0.0
    %103 = vmatprep.subr.mxu0 0.0
    %104 = vmatpush2.msra.mxu0 0.0
    %105 = vmatprep.subr.mxu0 0.0
    %106 = vmatpush2.msra.mxu0 0.0
    %107 = vmatprep.subr.mxu0 0.0
    %108 = vmatpush2.msra.mxu0 0.0
    %109 = vmatprep.subr.mxu0 0.0
    %110 = vmatpush2.msra.mxu0 0.0
    %111 = vmatprep.subr.mxu0 0.0
    %112 = vmatpush2.msra.mxu0 0.0
    %113 = vmatprep.subr.mxu0 0.0
    %114 = vmatpush2.msra.mxu0 0.0
    %115 = vmatprep.subr.mxu0 0.0
    %116 = vmatpush2.msra.mxu0 0.0
    %117 = vmatprep.subr.mxu0 0.0
    %118 = vmatpush2.msra.mxu0 0.0
    %119 = vmatprep.subr.mxu0 0.0
    %120 = vmatpush2.msra.mxu0 0.0
    %121 = vmatprep.mubr.f32.mxu0 0.0
    %122 = vmatmul.mubr.f32.gmra.mxu0 %v55
    %v123 = vpop.f32.mrf.mxu0
    %v124 = vadd.f32 %v51, %v123
    %v125 = vpop.f32.mrf.mxu0
    %126 = vdwg.mxu0
    %127 = vmax.xlane.f32.xlu0 %v124
    %v128 = vpop.xlane.xlu0 %127
    %v129 = vsub.f32 %v124, %v128
    %v130 = vmul.f32 %v129, 1.442695
    %v131 = vpow.pop %v130
    %132 = vadd.xlane.f32.xlu0 %v131
    %v133 = vpop.xlane.xlu0 %132
    %v134 = vlog2.pop %v133
    %v135 = vmul.f32 %v134, 0.6931472
    %v136 = vsub.f32 %v129, %v135
    %137 = vst [vmem:[#allocation7] sm:$0xff] %v136
    // Predicated region
    $region22: #{tpu_custom_call.1} parent=1 // pred_check
      _
    $region23: #{tpu_custom_call.1} parent=1 // pred_check_branch
      %139 = sbr.rel (0) target = $region25
    $region24: #{tpu_custom_call.1} parent=1 // pred_region
      %s141 = ssub.s32 128, 128
      %142 = vsyncadd [#allocation4], %s141
      %s144 = sshll.u32 [#allocation7], 4
      %s145 = int_to_ptr.vmem [resolvable:$true] %s144
      %147 = dma.vmem_to_hbm [thread:$0]  %s145, 128, %s3, [#allocation4]
    $region25: #{tpu_custom_call.1} parent=1 // pred_fallthru
      _
    // Predicated region
    $region26: #{tpu_custom_call.1} parent=1 // pred_check
      _
    $region27: #{tpu_custom_call.1} parent=1 // pred_check_branch
      %149 = sbr.rel (0) target = $region29
    $region28: #{tpu_custom_call.1} parent=1 // pred_region
      %150 = dma.done [#allocation4], 128
    $region29: #{tpu_custom_call.1} parent=1 // pred_fallthru
      _
    %151 = vsyncpa [#allocation3], 1
    %152 = vsyncpa [#allocation6], 1
    %153 = vsyncpa [#allocation4], 1

// kernel: tpu_custom_call.1
$region0: #{tpu_custom_call.1}
  #allocation0 [shape = 'u32[]', space=smem, size = 0x4, offset = 0x4, fixed_abs, tag = 'smem constant byte address 0x4 - core index']
  #allocation1 [shape = 'u32[144,128]{1,0:T(1,128)}', space=vmem, size = 0x12000, scoped, tag = 'internal scratch']
  %s0 = inlined_call_operand.hbm [shape: f32[8,32], index: 0, kind: input, shape index: {}]
  %s1 = inlined_call_operand.hbm [shape: f32[32,128], index: 1, kind: input, shape index: {}]
  %s2 = inlined_call_operand.vmem [shape: f32[1,128], index: 2, kind: input, shape index: {}]
  %s3 = inlined_call_operand.hbm [shape: f32[8,128], index: 3, kind: output, shape index: {}]
  %s4 = sld [smem:[#allocation0]]
  $region30: #{tpu_custom_call.1} parent=0
    _
  %s6 = ssub.s32 1, %s4
  %s7 = scalar_select 0, %s6, %s4
  $region1: #{tpu_custom_call.1} parent=0
    #allocation2 [shape = 'u8[4096]{0}', space=vmem, size = 0x1000, scoped, tag = 'input window, operand 0, single buffered']
    #allocation3 [shape = 's32[1]{0}', space=sflag, size = 0x4, scoped, tag = 'scoped memory for tpu_custom_call.1']
    #allocation4 [shape = 's32[1]{0}', space=sflag, size = 0x4, scoped, tag = 'scoped memory for tpu_custom_call.1']
    #allocation5 [shape = 'u8[16384]{0}', space=vmem, size = 0x4000, scoped, tag = 'input window, operand 1, single buffered']
    #allocation6 [shape = 's32[1]{0}', space=sflag, size = 0x4, scoped, tag = 'scoped memory for tpu_custom_call.1']
    #allocation7 [shape = 'u8[4096]{0}', space=vmem, size = 0x1000, scoped, tag = 'output window, operand 0, single buffered']
    %8 = vsyncpa [#allocation3], 0
    %9 = vsyncpa [#allocation6], 0
    %10 = vsyncpa [#allocation4], 0
    // Predicated region
    $region2: #{tpu_custom_call.1} parent=1 // pred_check
      _
    $region3: #{tpu_custom_call.1} parent=1 // pred_check_branch
      %12 = sbr.rel (0) target = $region5
    $region4: #{tpu_custom_call.1} parent=1 // pred_region
      %s14 = ssub.s32 128, 128
      %15 = vsyncadd [#allocation3], %s14
      %s17 = sshll.u32 [#allocation2], 4
      %s18 = int_to_ptr.vmem [resolvable:$true] %s17
      %20 = dma.hbm_to_vmem [thread:$0]  %s0, 128, %s18, [#allocation3]
    $region5: #{tpu_custom_call.1} parent=1 // pred_fallthru
      _
    // Predicated region
    $region6: #{tpu_custom_call.1} parent=1 // pred_check
      _
    $region7: #{tpu_custom_call.1} parent=1 // pred_check_branch
      %22 = sbr.rel (0) target = $region9
    $region8: #{tpu_custom_call.1} parent=1 // pred_region
      %s24 = ssub.s32 512, 512
      %25 = vsyncadd [#allocation6], %s24
      %s26 = sshll.u32 [#allocation5], 4
      %s27 = int_to_ptr.vmem [resolvable:$true] %s26
      %32 = dma.hbm_to_vmem [thread:$0]  %s1, 512, %s27, [#allocation6], 128, 128, 8
    $region9: #{tpu_custom_call.1} parent=1 // pred_fallthru
      _
    // Predicated region
    $region10: #{tpu_custom_call.1} parent=1 // pred_check
      _
    $region11: #{tpu_custom_call.1} parent=1 // pred_check_branch
      %34 = sbr.rel (0) target = $region13
    $region12: #{tpu_custom_call.1} parent=1 // pred_region
      _
    $region13: #{tpu_custom_call.1} parent=1 // pred_fallthru
      _
    // Predicated region
    $region14: #{tpu_custom_call.1} parent=1 // pred_check
      _
    $region15: #{tpu_custom_call.1} parent=1 // pred_check_branch
      %36 = sbr.rel (0) target = $region17
    $region16: #{tpu_custom_call.1} parent=1 // pred_region
      %37 = dma.done [#allocation3], 128
    $region17: #{tpu_custom_call.1} parent=1 // pred_fallthru
      _
    // Predicated region
    $region18: #{tpu_custom_call.1} parent=1 // pred_check
      _
    $region19: #{tpu_custom_call.1} parent=1 // pred_check_branch
      %39 = sbr.rel (0) target = $region21
    $region20: #{tpu_custom_call.1} parent=1 // pred_region
      %40 = dma.done [#allocation6], 512
    $region21: #{tpu_custom_call.1} parent=1 // pred_fallthru
      _
    %v41 = vld [vmem:[#allocation2] sm:$0xff]
    %v42 = vld [vmem:[#allocation5] sm:$0xff]
    %v43 = vld [vmem:[#allocation5 + $0x8] sm:$0xff]
    %v44 = vld [vmem:[#allocation5 + $0x10] sm:$0xff]
    %v45 = vld [vmem:[#allocation5 + $0x18] sm:$0xff]
    %v46 = vld [vmem:[%s2] sm:$0x1]
    %v48 = vlaneseq
    %v49 = vshrl.u32 %v48, 7
    %v50 = vsub.s32 0, %v49
    %v51 = vrot.slane %v46, %v50
    %vm53 = vcmask 261120
    %v55 = vsel %vm53, %v41, 0
    %57 = vmatprep.subr.mxu0 0.0
    %58 = vmatpush1.msra.mxu0 0.0
    %59 = vmatprep.subr.mxu0 0.0
    %60 = vmatpush1.msra.mxu0 0.0
    %61 = vmatprep.subr.mxu0 0.0
    %62 = vmatpush1.msra.mxu0 0.0
    %63 = vmatprep.subr.mxu0 0.0
    %64 = vmatpush1.msra.mxu0 0.0
    %65 = vmatprep.subr.mxu0 0.0
    %66 = vmatpush1.msra.mxu0 0.0
    %67 = vmatprep.subr.mxu0 0.0
    %68 = vmatpush1.msra.mxu0 0.0
    %69 = vmatprep.subr.mxu0 0.0
    %70 = vmatpush1.msra.mxu0 0.0
    %71 = vmatprep.subr.mxu0 0.0
    %72 = vmatpush1.msra.mxu0 0.0
    %73 = vmatprep.subr.mxu0 0.0
    %74 = vmatpush1.msra.mxu0 0.0
    %75 = vmatprep.subr.mxu0 0.0
    %76 = vmatpush1.msra.mxu0 0.0
    %77 = vmatprep.subr.mxu0 0.0
    %78 = vmatpush1.msra.mxu0 0.0
    %79 = vmatprep.subr.mxu0 0.0
    %80 = vmatpush1.msra.mxu0 0.0
    %81 = vmatprep.subr.mxu0 0.0
    %82 = vmatpush1.msra.mxu0 %v45
    %83 = vmatprep.subr.mxu0 0.0
    %84 = vmatpush1.msra.mxu0 %v44
    %85 = vmatprep.subr.mxu0 0.0
    %86 = vmatpush1.msra.mxu0 %v43
    %87 = vmatprep.subr.mxu0 0.0
    %88 = vmatpush1.msra.mxu0 %v42
    %89 = vmatprep.subr.mxu0 0.0
    %90 = vmatpush2.msra.mxu0 0.0
    %91 = vmatprep.subr.mxu0 0.0
    %92 = vmatpush2.msra.mxu0 0.0
    %93 = vmatprep.subr.mxu0 0.0
    %94 = vmatpush2.msra.mxu0 0.0
    %95 = vmatprep.subr.mxu0 0.0
    %96 = vmatpush2.msra.mxu0 0.0
    %97 = vmatprep.subr.mxu0 0.0
    %98 = vmatpush2.msra.mxu0 0.0
    %99 = vmatprep.subr.mxu0 0.0
    %100 = vmatpush2.msra.mxu0 0.0
    %101 = vmatprep.subr.mxu0 0.0
    %102 = vmatpush2.msra.mxu0 0.0
    %103 = vmatprep.subr.mxu0 0.0
    %104 = vmatpush2.msra.mxu0 0.0
    %105 = vmatprep.subr.mxu0 0.0
    %106 = vmatpush2.msra.mxu0 0.0
    %107 = vmatprep.subr.mxu0 0.0
    %108 = vmatpush2.msra.mxu0 0.0
    %109 = vmatprep.subr.mxu0 0.0
    %110 = vmatpush2.msra.mxu0 0.0
    %111 = vmatprep.subr.mxu0 0.0
    %112 = vmatpush2.msra.mxu0 0.0
    %113 = vmatprep.subr.mxu0 0.0
    %114 = vmatpush2.msra.mxu0 0.0
    %115 = vmatprep.subr.mxu0 0.0
    %116 = vmatpush2.msra.mxu0 0.0
    %117 = vmatprep.subr.mxu0 0.0
    %118 = vmatpush2.msra.mxu0 0.0
    %119 = vmatprep.subr.mxu0 0.0
    %120 = vmatpush2.msra.mxu0 0.0
    %121 = vmatprep.mubr.f32.mxu0 0.0
    %122 = vmatmul.mubr.f32.gmra.mxu0 %v55
    %v123 = vpop.f32.mrf.mxu0
    %v124 = vadd.f32 %v51, %v123
    %v125 = vpop.f32.mrf.mxu0
    %126 = vdwg.mxu0
    %127 = vmax.xlane.f32.xlu0 %v124
    %v128 = vpop.xlane.xlu0 %127
    %v129 = vsub.f32 %v124, %v128
    %v130 = vmul.f32 %v129, 1.442695
    %v131 = vpow.pop %v130
    %132 = vadd.xlane.f32.xlu0 %v131
    %v133 = vpop.xlane.xlu0 %132
    %v134 = vlog2.pop %v133
    %v135 = vmul.f32 %v134, 0.6931472
    %v136 = vsub.f32 %v129, %v135
    %137 = vst [vmem:[#allocation7] sm:$0xff] %v136
    // Predicated region
    $region22: #{tpu_custom_call.1} parent=1 // pred_check
      _
    $region23: #{tpu_custom_call.1} parent=1 // pred_check_branch
      %139 = sbr.rel (0) target = $region25
    $region24: #{tpu_custom_call.1} parent=1 // pred_region
      %s141 = ssub.s32 128, 128
      %142 = vsyncadd [#allocation4], %s141
      %s144 = sshll.u32 [#allocation7], 4
      %s145 = int_to_ptr.vmem [resolvable:$true] %s144
      %147 = dma.vmem_to_hbm [thread:$0]  %s145, 128, %s3, [#allocation4]
    $region25: #{tpu_custom_call.1} parent=1 // pred_fallthru
      _
    // Predicated region
    $region26: #{tpu_custom_call.1} parent=1 // pred_check
      _
    $region27: #{tpu_custom_call.1} parent=1 // pred_check_branch
      %149 = sbr.rel (0) target = $region29
    $region28: #{tpu_custom_call.1} parent=1 // pred_region
      %150 = dma.done [#allocation4], 128
    $region29: #{tpu_custom_call.1} parent=1 // pred_fallthru
      _
    %151 = vsyncpa [#allocation3], 1
    %152 = vsyncpa [#allocation6], 1
    %153 = vsyncpa [#allocation4], 1

</llo_original>
